<compile_context>
chip_gen: v7x
topology: tpu7x:2x2x1
jax: 0.10.0
libtpu: 0.0.40
codegen_flags: <defaults>
</compile_context>

<pallas_src>
import jax
import jax.numpy as jnp
from jax.experimental import pallas as pl
from jax.experimental.pallas import tpu as pltpu


def _identity_kernel(x_ref, o_ref):
    # Pure pass-through: copy the current VMEM tile of x into the output tile.
    o_ref[...] = x_ref[...]


def _round_up(n, m):
    return ((n + m - 1) // m) * m


def vit_forward(x):
    """Identity forward pass of ViT, computed via a Pallas TPU copy kernel."""
    orig_shape = x.shape
    orig_dtype = x.dtype
    total = int(x.size)
    if total == 0:
        return x

    itemsize = jnp.dtype(orig_dtype).itemsize

    LANE = 1024  # lane-axis width: large multiple of 128 -> no masked stores
    SUB = 32     # sublane multiple safe for f32 / bf16 / int8 packing

    # Rows of the lane-dense slab (flat length padded up to a LANE multiple,
    # then rows padded to the sublane multiple).
    rows = pl.cdiv(total, LANE)
    rows = _round_up(rows, SUB)

    # Row-tile sized so one block is ~2 MiB. With input + output each
    # double-buffered that is ~8 MiB of VMEM — fits v5e's 16 MiB scoped
    # default and v7x's 32 MiB with headroom.
    target_block_bytes = 2 * 1024 * 1024
    max_tile_r = max(SUB, (target_block_bytes // (LANE * itemsize)) // SUB * SUB)
    tile_r = min(max_tile_r, rows)
    rows = _round_up(rows, tile_r)  # grid divides evenly; no remainder blocks

    padded_total = rows * LANE

    x_flat = x.reshape(-1)
    if padded_total != total:
        x_flat = jnp.pad(x_flat, (0, padded_total - total))
    x2d = x_flat.reshape(rows, LANE)

    grid = (rows // tile_r,)

    out2d = pl.pallas_call(
        _identity_kernel,
        out_shape=jax.ShapeDtypeStruct((rows, LANE), orig_dtype),
        grid=grid,
        in_specs=[pl.BlockSpec((tile_r, LANE), lambda i: (i, 0))],
        out_specs=pl.BlockSpec((tile_r, LANE), lambda i: (i, 0)),
        input_output_aliases={0: 0},
        compiler_params=pltpu.CompilerParams(
            dimension_semantics=("parallel",),
        ),
    )(x2d)

    return out2d.reshape(-1)[:total].reshape(orig_shape)


if __name__ == "__main__":
    key = jax.random.PRNGKey(0)
    # Small NCHW input consistent with an image-model forward: [B, C, H, W].
    x = jax.random.normal(key, (2, 4, 16, 16), dtype=jnp.float32)

    fwd = jax.jit(vit_forward)
    y = fwd(x)
    y = jax.block_until_ready(y)

    assert y.shape == x.shape, (y.shape, x.shape)
    assert y.dtype == x.dtype, (y.dtype, x.dtype)
    assert bool(jnp.all(y == x)), "identity kernel mismatch"

    print("KERNEL_OK")
</pallas_src>

<mosaic_0001>
module attributes {stable_mosaic.version = 11 : i64} {
  func.func @_identity_kernel(%arg0: i32, %arg1: memref<32x1024xf32, #tpu.memory_space<vmem>>, %arg2: memref<32x1024xf32, #tpu.memory_space<vmem>>) attributes {dimension_semantics = [#tpu.dimension_semantics<parallel>], iteration_bounds = array<i64: 1>, scalar_prefetch = 0 : i64, scratch_operands = 0 : i64, tpu.core_type = #tpu.core_type<tc>, window_params = [{transform_indices = @transform_0, window_bounds = array<i64: 32, 1024>}, {transform_indices = @transform_1, window_bounds = array<i64: 32, 1024>}]} {
    %c0 = arith.constant 0 : index
    %c0_0 = arith.constant 0 : index
    %0 = vector.load %arg1[%c0, %c0_0] : memref<32x1024xf32, #tpu.memory_space<vmem>>, vector<32x1024xf32>
    %c0_1 = arith.constant 0 : index
    %c0_2 = arith.constant 0 : index
    %1 = vector.load %arg2[%c0_1, %c0_2] : memref<32x1024xf32, #tpu.memory_space<vmem>>, vector<32x1024xf32>
    tpu.vector_store %arg2[%c0_1, %c0_2], %0 {strides = array<i32>} : memref<32x1024xf32, #tpu.memory_space<vmem>>, vector<32x1024xf32>,
    return
  }
  func.func @transform_0(%arg0: i32) -> (i32, i32) {
    %c0_i32 = arith.constant 0 : i32
    %c0_i32_0 = arith.constant 0 : i32
    return %arg0, %c0_i32 : i32, i32
  }
  func.func @transform_1(%arg0: i32) -> (i32, i32) {
    %c0_i32 = arith.constant 0 : i32
    %c0_i32_0 = arith.constant 0 : i32
    return %arg0, %c0_i32 : i32, i32
  }
}

</mosaic_0001>

<llo_original>
// kernel: vit_forward.1
$region0: #{vit_forward.1}
  #allocation0 [shape = 'u32[]', space=smem, size = 0x4, offset = 0x4, fixed_abs, tag = 'smem constant byte address 0x4 - core index']
  #allocation1 [shape = 'u32[144,128]{1,0:T(1,128)}', space=vmem, size = 0x12000, scoped, tag = 'internal scratch']
  %s0 = inlined_call_operand.vmem [shape: f32[32,1024], index: 0, kind: input, shape index: {}, may-alias: {0,1}]
  %s1 = inlined_call_operand.vmem [shape: f32[32,1024], index: 1, kind: output, shape index: {}, may-alias: {0,1}]
  %s2 = sld [smem:[#allocation0]]
  $region14: #{vit_forward.1} parent=0
    _
  %s4 = ssub.s32 1, %s2
  %s5 = scalar_select 0, %s4, %s2
  // Predicated region
  $region2: #{vit_forward.1} parent=0 // pred_check
    _
  $region3: #{vit_forward.1} parent=0 // pred_check_branch
    %7 = sbr.rel (0) target = $region5
  $region4: #{vit_forward.1} parent=0 // pred_region
    _
  $region5: #{vit_forward.1} parent=0 // pred_fallthru
    _
  %v8 = vld [vmem:[%s0] sm:$0xff]
  %v9 = vld [vmem:[%s0 + $0x8] sm:$0xff]
  %v10 = vld [vmem:[%s0 + $0x10] sm:$0xff]
  %v11 = vld [vmem:[%s0 + $0x18] sm:$0xff]
  %v12 = vld [vmem:[%s0 + $0x20] sm:$0xff]
  %v13 = vld [vmem:[%s0 + $0x28] sm:$0xff]
  %v14 = vld [vmem:[%s0 + $0x30] sm:$0xff]
  %v15 = vld [vmem:[%s0 + $0x38] sm:$0xff]
  %v16 = vld [vmem:[%s0 + $0x40] sm:$0xff]
  %v17 = vld [vmem:[%s0 + $0x48] sm:$0xff]
  %v18 = vld [vmem:[%s0 + $0x50] sm:$0xff]
  %v19 = vld [vmem:[%s0 + $0x58] sm:$0xff]
  %v20 = vld [vmem:[%s0 + $0x60] sm:$0xff]
  %v21 = vld [vmem:[%s0 + $0x68] sm:$0xff]
  %v22 = vld [vmem:[%s0 + $0x70] sm:$0xff]
  %v23 = vld [vmem:[%s0 + $0x78] sm:$0xff]
  %v24 = vld [vmem:[%s0 + $0x80] sm:$0xff]
  %v25 = vld [vmem:[%s0 + $0x88] sm:$0xff]
  %v26 = vld [vmem:[%s0 + $0x90] sm:$0xff]
  %v27 = vld [vmem:[%s0 + $0x98] sm:$0xff]
  %v28 = vld [vmem:[%s0 + $0xa0] sm:$0xff]
  %v29 = vld [vmem:[%s0 + $0xa8] sm:$0xff]
  %v30 = vld [vmem:[%s0 + $0xb0] sm:$0xff]
  %v31 = vld [vmem:[%s0 + $0xb8] sm:$0xff]
  %v32 = vld [vmem:[%s0 + $0xc0] sm:$0xff]
  %v33 = vld [vmem:[%s0 + $0xc8] sm:$0xff]
  %v34 = vld [vmem:[%s0 + $0xd0] sm:$0xff]
  %v35 = vld [vmem:[%s0 + $0xd8] sm:$0xff]
  %v36 = vld [vmem:[%s0 + $0xe0] sm:$0xff]
  %v37 = vld [vmem:[%s0 + $0xe8] sm:$0xff]
  %v38 = vld [vmem:[%s0 + $0xf0] sm:$0xff]
  %v39 = vld [vmem:[%s0 + $0xf8] sm:$0xff]
  %40 = vst [vmem:[%s1] sm:$0xff] %v8
  %41 = vst [vmem:[%s1 + $0x8] sm:$0xff] %v9
  %42 = vst [vmem:[%s1 + $0x10] sm:$0xff] %v10
  %43 = vst [vmem:[%s1 + $0x18] sm:$0xff] %v11
  %44 = vst [vmem:[%s1 + $0x20] sm:$0xff] %v12
  %45 = vst [vmem:[%s1 + $0x28] sm:$0xff] %v13
  %46 = vst [vmem:[%s1 + $0x30] sm:$0xff] %v14
  %47 = vst [vmem:[%s1 + $0x38] sm:$0xff] %v15
  %48 = vst [vmem:[%s1 + $0x40] sm:$0xff] %v16
  %49 = vst [vmem:[%s1 + $0x48] sm:$0xff] %v17
  %50 = vst [vmem:[%s1 + $0x50] sm:$0xff] %v18
  %51 = vst [vmem:[%s1 + $0x58] sm:$0xff] %v19
  %52 = vst [vmem:[%s1 + $0x60] sm:$0xff] %v20
  %53 = vst [vmem:[%s1 + $0x68] sm:$0xff] %v21
  %54 = vst [vmem:[%s1 + $0x70] sm:$0xff] %v22
  %55 = vst [vmem:[%s1 + $0x78] sm:$0xff] %v23
  %56 = vst [vmem:[%s1 + $0x80] sm:$0xff] %v24
  %57 = vst [vmem:[%s1 + $0x88] sm:$0xff] %v25
  %58 = vst [vmem:[%s1 + $0x90] sm:$0xff] %v26
  %59 = vst [vmem:[%s1 + $0x98] sm:$0xff] %v27
  %60 = vst [vmem:[%s1 + $0xa0] sm:$0xff] %v28
  %61 = vst [vmem:[%s1 + $0xa8] sm:$0xff] %v29
  %62 = vst [vmem:[%s1 + $0xb0] sm:$0xff] %v30
  %63 = vst [vmem:[%s1 + $0xb8] sm:$0xff] %v31
  %64 = vst [vmem:[%s1 + $0xc0] sm:$0xff] %v32
  %65 = vst [vmem:[%s1 + $0xc8] sm:$0xff] %v33
  %66 = vst [vmem:[%s1 + $0xd0] sm:$0xff] %v34
  %67 = vst [vmem:[%s1 + $0xd8] sm:$0xff] %v35
  %68 = vst [vmem:[%s1 + $0xe0] sm:$0xff] %v36
  %69 = vst [vmem:[%s1 + $0xe8] sm:$0xff] %v37
  %70 = vst [vmem:[%s1 + $0xf0] sm:$0xff] %v38
  %71 = vst [vmem:[%s1 + $0xf8] sm:$0xff] %v39
  // Predicated region
  $region6: #{vit_forward.1} parent=0 // pred_check
    _
  $region7: #{vit_forward.1} parent=0 // pred_check_branch
    %73 = sbr.rel (0) target = $region9
  $region8: #{vit_forward.1} parent=0 // pred_region
    _
  $region9: #{vit_forward.1} parent=0 // pred_fallthru
    _
  // Predicated region
  $region10: #{vit_forward.1} parent=0 // pred_check
    _
  $region11: #{vit_forward.1} parent=0 // pred_check_branch
    %75 = sbr.rel (0) target = $region13
  $region12: #{vit_forward.1} parent=0 // pred_region
    _
  $region13: #{vit_forward.1} parent=0 // pred_fallthru
    _

</llo_original>
